<compile_context>
chip_gen: v6e
topology: v6e:2x2x1
jax: 0.10.0
libtpu: 0.0.40
codegen_flags: <defaults>
</compile_context>

<pallas_src>
import functools

import jax
import jax.numpy as jnp
from jax.experimental import pallas as pl
from jax.experimental.pallas import tpu as pltpu


def batchnorm_kernel(x_ref, scale_ref, shift_ref, o_ref, *, epsilon, block_e):
    # x_ref block: (N, TE) -- full batch dim so the dim-0 reduction is local.
    j = pl.program_id(0)
    start = pl.multiple_of(j * block_e, block_e)  # aligned slice into resident params

    x = x_ref[...].astype(jnp.float32)                       # (N, TE)
    inv_n = jnp.float32(1.0 / x.shape[0])

    # One reduction pass: sum and sum-of-squares.
    s = jnp.sum(x, axis=0, keepdims=True)                    # (1, TE)
    ss = jnp.sum(x * x, axis=0, keepdims=True)               # (1, TE)
    mean = s * inv_n
    var = jnp.maximum(ss * inv_n - mean * mean, 0.0)         # unbiased=False
    inv_std = jax.lax.rsqrt(var + epsilon)                   # EUP, ~free slot

    scale = scale_ref[:, pl.ds(start, block_e)].astype(jnp.float32)  # (1, TE)
    shift = shift_ref[:, pl.ds(start, block_e)].astype(jnp.float32)  # (1, TE)

    # ((x - mean)*inv_std + shift)*scale == x*a + b
    a = inv_std * scale
    b = (shift - mean * inv_std) * scale
    o_ref[...] = (x * a + b).astype(o_ref.dtype)


def _choose_te(n, e, budget_bytes=24 * 1024 * 1024, te_cap=2048):
    """Largest lane-aligned feature tile whose double-buffered in+out f32 blocks
    fit a v7x-safe VMEM budget."""
    # per step: 2 buffers x (in + out) x N*TE*4B  =  16 * N * TE bytes
    max_te = budget_bytes // (16 * max(n, 1))
    max_te = max(128, (max_te // 128) * 128)
    e_ceil = ((e + 127) // 128) * 128
    return max(128, min(te_cap, max_te, e_ceil))


def batchnorm(x, scale, shift, epsilon=1e-7):
    """x: (N, E), scale/shift: (E,). Returns (N, E)."""
    N, E = x.shape
    TE = _choose_te(N, E)
    # TODO(synk): for very large N (block N*TE*4B exceeding the VMEM budget even
    # at TE=128), switch to a two-pass grid over the batch axis (sum/sumsq
    # accumulation with pl.when init/finalize, then a normalize pass).

    # Pad the feature axis to a multiple of TE so all stores are lane-dense.
    E_pad = ((E + TE - 1) // TE) * TE
    if E_pad != E:
        x_p = jnp.pad(x, ((0, 0), (0, E_pad - E)))
        scale_p = jnp.pad(scale, (0, E_pad - E), constant_values=1.0)
        shift_p = jnp.pad(shift, (0, E_pad - E))
    else:
        x_p, scale_p, shift_p = x, scale, shift
    scale2 = scale_p.reshape(1, E_pad)
    shift2 = shift_p.reshape(1, E_pad)

    grid = (E_pad // TE,)
    kernel = functools.partial(batchnorm_kernel, epsilon=epsilon, block_e=TE)

    itemsize = jnp.dtype(x.dtype).itemsize
    cost = pl.CostEstimate(
        flops=5 * N * E_pad,
        transcendentals=E_pad,
        bytes_accessed=2 * N * E_pad * itemsize + 2 * E_pad * 4,
    )

    out = pl.pallas_call(
        kernel,
        out_shape=jax.ShapeDtypeStruct((N, E_pad), x.dtype),
        grid_spec=pltpu.PrefetchScalarGridSpec(
            num_scalar_prefetch=0,
            grid=grid,
            in_specs=[
                pl.BlockSpec((N, TE), lambda j: (0, j)),
                # scale/shift stay resident (constant block index => no re-DMA).
                pl.BlockSpec((1, E_pad), lambda j: (0, 0)),
                pl.BlockSpec((1, E_pad), lambda j: (0, 0)),
            ],
            out_specs=pl.BlockSpec((N, TE), lambda j: (0, j)),
        ),
        compiler_params=pltpu.CompilerParams(
            dimension_semantics=("parallel",),
            vmem_limit_bytes=32 * 1024 * 1024,
        ),
        cost_estimate=cost,
    )(x_p, scale2, shift2)

    if E_pad != E:
        out = out[:, :E]
    return out


if __name__ == "__main__":
    key = jax.random.PRNGKey(0)
    N, E = 8, 32  # batch=8, emb_size=32

    x = jax.random.normal(key, (N, E), dtype=jnp.float32)
    # Deterministic parameter init matching nn.Parameter(torch.ones/zeros(emb_size)).
    scale = jnp.ones((E,), dtype=jnp.float32)
    shift = jnp.zeros((E,), dtype=jnp.float32)

    out = batchnorm(x, scale, shift, epsilon=1e-7)
    out = jax.block_until_ready(out)

    # Pure-JAX reference (same math as the PyTorch forward).
    x_mean = jnp.mean(x, axis=0, keepdims=True)
    x_var = jnp.var(x, axis=0, keepdims=True)  # ddof=0 == unbiased=False
    ref = ((x - x_mean) / jnp.sqrt(x_var + 1e-7) + shift) * scale

    assert out.shape == (N, E) and out.dtype == x.dtype
    assert jnp.allclose(out, ref, atol=1e-5, rtol=1e-5), "mismatch vs reference"
    print("KERNEL_OK")
</pallas_src>

<mosaic_0001>
module attributes {stable_mosaic.version = 11 : i64} {
  func.func @batchnorm_kernel(%arg0: i32, %arg1: memref<8x128xf32, #tpu.memory_space<vmem>>, %arg2: memref<1x128xf32, #tpu.memory_space<vmem>>, %arg3: memref<1x128xf32, #tpu.memory_space<vmem>>, %arg4: memref<8x128xf32, #tpu.memory_space<vmem>>) attributes {dimension_semantics = [#tpu.dimension_semantics<parallel>], iteration_bounds = array<i64: 1>, scalar_prefetch = 0 : i64, scratch_operands = 0 : i64, tpu.core_type = #tpu.core_type<tc>, window_params = [{transform_indices = @transform_0, window_bounds = array<i64: 8, 128>}, {pipeline_mode = #tpu.pipeline_mode<synchronous>, transform_indices = @transform_1, window_bounds = array<i64: 1, 128>}, {pipeline_mode = #tpu.pipeline_mode<synchronous>, transform_indices = @transform_2, window_bounds = array<i64: 1, 128>}, {transform_indices = @transform_3, window_bounds = array<i64: 8, 128>}]} {
    %c128_i32 = arith.constant 128 : i32
    %0 = arith.muli %arg0, %c128_i32 : i32
    %1 = tpu.assume_multiple %0, 128 : i32
    %c0 = arith.constant 0 : index
    %c0_0 = arith.constant 0 : index
    %2 = vector.load %arg1[%c0, %c0_0] : memref<8x128xf32, #tpu.memory_space<vmem>>, vector<8x128xf32>
    %cst = arith.constant dense<0.000000e+00> : vector<128xf32>
    %3 = vector.multi_reduction <add>, %2, %cst [0] : vector<8x128xf32> to vector<128xf32>
    %4 = vector.shape_cast %3 : vector<128xf32> to vector<1x128xf32>
    %5 = arith.mulf %2, %2 : vector<8x128xf32>
    %cst_1 = arith.constant dense<0.000000e+00> : vector<128xf32>
    %6 = vector.multi_reduction <add>, %5, %cst_1 [0] : vector<8x128xf32> to vector<128xf32>
    %7 = vector.shape_cast %6 : vector<128xf32> to vector<1x128xf32>
    %cst_2 = arith.constant 1.250000e-01 : f32
    %8 = vector.broadcast %cst_2 : f32 to vector<1x128xf32>
    %9 = arith.mulf %4, %8 : vector<1x128xf32>
    %cst_3 = arith.constant 1.250000e-01 : f32
    %10 = vector.broadcast %cst_3 : f32 to vector<1x128xf32>
    %11 = arith.mulf %7, %10 : vector<1x128xf32>
    %12 = arith.mulf %9, %9 : vector<1x128xf32>
    %13 = arith.subf %11, %12 : vector<1x128xf32>
    %cst_4 = arith.constant 0.000000e+00 : f32
    %14 = vector.broadcast %cst_4 : f32 to vector<1x128xf32>
    %15 = arith.maximumf %13, %14 : vector<1x128xf32>
    %cst_5 = arith.constant 1.000000e-07 : f32
    %16 = vector.broadcast %cst_5 : f32 to vector<1x128xf32>
    %17 = arith.addf %15, %16 : vector<1x128xf32>
    %18 = math.rsqrt %17 : vector<1x128xf32>
    %c0_6 = arith.constant 0 : index
    %19 = arith.index_cast %1 : i32 to index
    %20 = vector.load %arg2[%c0_6, %19] : memref<1x128xf32, #tpu.memory_space<vmem>>, vector<1x128xf32>
    %c0_7 = arith.constant 0 : index
    %21 = arith.index_cast %1 : i32 to index
    %22 = vector.load %arg3[%c0_7, %21] : memref<1x128xf32, #tpu.memory_space<vmem>>, vector<1x128xf32>
    %23 = arith.mulf %18, %20 : vector<1x128xf32>
    %24 = arith.mulf %9, %18 : vector<1x128xf32>
    %25 = arith.subf %22, %24 : vector<1x128xf32>
    %26 = arith.mulf %25, %20 : vector<1x128xf32>
    %27 = vector.broadcast %23 : vector<1x128xf32> to vector<8x128xf32>
    %28 = arith.mulf %2, %27 : vector<8x128xf32>
    %29 = vector.broadcast %26 : vector<1x128xf32> to vector<8x128xf32>
    %30 = arith.addf %28, %29 : vector<8x128xf32>
    %c0_8 = arith.constant 0 : index
    %c0_9 = arith.constant 0 : index
    %31 = vector.load %arg4[%c0_8, %c0_9] : memref<8x128xf32, #tpu.memory_space<vmem>>, vector<8x128xf32>
    tpu.vector_store %arg4[%c0_8, %c0_9], %30 {strides = array<i32>} : memref<8x128xf32, #tpu.memory_space<vmem>>, vector<8x128xf32>,
    return
  }
  func.func @transform_0(%arg0: i32) -> (i32, i32) {
    %c0_i32 = arith.constant 0 : i32
    %c0_i32_0 = arith.constant 0 : i32
    return %c0_i32, %arg0 : i32, i32
  }
  func.func @transform_1(%arg0: i32) -> (i32, i32) {
    %c0_i32 = arith.constant 0 : i32
    %c0_i32_0 = arith.constant 0 : i32
    %c0_i32_1 = arith.constant 0 : i32
    return %c0_i32, %c0_i32_0 : i32, i32
  }
  func.func @transform_2(%arg0: i32) -> (i32, i32) {
    %c0_i32 = arith.constant 0 : i32
    %c0_i32_0 = arith.constant 0 : i32
    %c0_i32_1 = arith.constant 0 : i32
    return %c0_i32, %c0_i32_0 : i32, i32
  }
  func.func @transform_3(%arg0: i32) -> (i32, i32) {
    %c0_i32 = arith.constant 0 : i32
    %c0_i32_0 = arith.constant 0 : i32
    return %c0_i32, %arg0 : i32, i32
  }
}

</mosaic_0001>

<llo_original>
// kernel: tpu_custom_call.1
$region0: #{tpu_custom_call.1}
  #allocation0 [shape = 'u32[]', space=smem, size = 0x4, offset = 0x4, fixed_abs, tag = 'smem constant byte address 0x4 - core index']
  #allocation1 [shape = 'u32[144,128]{1,0:T(1,128)}', space=vmem, size = 0x12000, scoped, tag = 'internal scratch']
  %s0 = inlined_call_operand.hbm [shape: f32[8,128], index: 0, kind: input, shape index: {}]
  %s1 = inlined_call_operand.vmem [shape: f32[1,128], index: 1, kind: input, shape index: {}]
  %s2 = inlined_call_operand.vmem [shape: f32[1,128], index: 2, kind: input, shape index: {}]
  %s3 = inlined_call_operand.hbm [shape: f32[8,128], index: 3, kind: output, shape index: {}]
  %s4 = sld [smem:[#allocation0]]
  $region26: #{tpu_custom_call.1} parent=0
    _
  %s6 = ssub.s32 1, %s4
  %s7 = scalar_select 0, %s6, %s4
  $region1: #{tpu_custom_call.1} parent=0
    #allocation2 [shape = 'u8[4096]{0}', space=vmem, size = 0x1000, scoped, tag = 'input window, operand 0, single buffered']
    #allocation3 [shape = 's32[1]{0}', space=sflag, size = 0x4, scoped, tag = 'scoped memory for tpu_custom_call.1']
    #allocation4 [shape = 's32[1]{0}', space=sflag, size = 0x4, scoped, tag = 'scoped memory for tpu_custom_call.1']
    #allocation5 [shape = 'u8[4096]{0}', space=vmem, size = 0x1000, scoped, tag = 'output window, operand 0, single buffered']
    %8 = vsyncpa [#allocation3], 0
    %9 = vsyncpa [#allocation4], 0
    // Predicated region
    $region2: #{tpu_custom_call.1} parent=1 // pred_check
      _
    $region3: #{tpu_custom_call.1} parent=1 // pred_check_branch
      %11 = sbr.rel (0) target = $region5
    $region4: #{tpu_custom_call.1} parent=1 // pred_region
      %s13 = ssub.s32 128, 128
      %14 = vsyncadd [#allocation3], %s13
      %s16 = sshll.u32 [#allocation2], 4
      %s17 = int_to_ptr.vmem [resolvable:$true] %s16
      %19 = dma.hbm_to_vmem [thread:$0]  %s0, 128, %s17, [#allocation3]
    $region5: #{tpu_custom_call.1} parent=1 // pred_fallthru
      _
    // Predicated region
    $region6: #{tpu_custom_call.1} parent=1 // pred_check
      _
    $region7: #{tpu_custom_call.1} parent=1 // pred_check_branch
      %21 = sbr.rel (0) target = $region9
    $region8: #{tpu_custom_call.1} parent=1 // pred_region
      _
    $region9: #{tpu_custom_call.1} parent=1 // pred_fallthru
      _
    // Predicated region
    $region10: #{tpu_custom_call.1} parent=1 // pred_check
      _
    $region11: #{tpu_custom_call.1} parent=1 // pred_check_branch
      %23 = sbr.rel (0) target = $region13
    $region12: #{tpu_custom_call.1} parent=1 // pred_region
      _
    $region13: #{tpu_custom_call.1} parent=1 // pred_fallthru
      _
    // Predicated region
    $region14: #{tpu_custom_call.1} parent=1 // pred_check
      _
    $region15: #{tpu_custom_call.1} parent=1 // pred_check_branch
      %25 = sbr.rel (0) target = $region17
    $region16: #{tpu_custom_call.1} parent=1 // pred_region
      %26 = dma.done [#allocation3], 128
    $region17: #{tpu_custom_call.1} parent=1 // pred_fallthru
      _
    %s27 = smul.u32 0, 128
    %v28 = vld [vmem:[#allocation2] sm:$0xff]
    %v29 = vrot.slane %v28, 4
    %v30 = vadd.f32 %v28, %v29
    %v31 = vrot.slane %v30, 2
    %v32 = vadd.f32 %v30, %v31
    %v33 = vrot.slane %v32, 1
    %v34 = vadd.f32 %v32, %v33
    %v35 = vmul.f32 %v28, %v28
    %v36 = vrot.slane %v35, 4
    %v37 = vadd.f32 %v35, %v36
    %v38 = vrot.slane %v37, 2
    %v39 = vadd.f32 %v37, %v38
    %v40 = vrot.slane %v39, 1
    %v41 = vadd.f32 %v39, %v40
    %v42 = vmul.f32 %v34, 0.125
    %v43 = vmul.f32 %v41, 0.125
    %v44 = vmul.f32 %v42, %v42
    %v45 = vsub.f32 %v43, %v44
    %v46 = vmax.f32 %v45, 0.0
    %v47 = vadd.f32 %v46, 1e-07
    %v48 = vrsqrt.pop %v47
    %s49 = sshra.s32 %s27, 7
    %s50 = sand.u32 %s27, 127
    %s51 = scalar_lea.vmem %s1, %s49
    %v52 = vld [vmem:[%s51] sm:$0x1]
    %s53 = scalar_lea.vmem %s2, %s49
    %v54 = vld [vmem:[%s53] sm:$0x1]
    %v55 = vmul.f32 %v48, %v52
    %v56 = vmul.f32 %v42, %v48
    %v57 = vsub.f32 %v54, %v56
    %v58 = vmul.f32 %v57, %v52
    %v59 = vlaneseq
    %v60 = vshrl.u32 %v59, 7
    %v61 = vsub.s32 0, %v60
    %v62 = vrot.slane %v55, %v61
    %v63 = vmul.f32 %v28, %v62
    %v65 = vlaneseq
    %v66 = vshrl.u32 %v65, 7
    %v67 = vsub.s32 0, %v66
    %v68 = vrot.slane %v58, %v67
    %v70 = vadd.f32 %v63, %v68
    %71 = vst [vmem:[#allocation5] sm:$0xff] %v70
    // Predicated region
    $region18: #{tpu_custom_call.1} parent=1 // pred_check
      _
    $region19: #{tpu_custom_call.1} parent=1 // pred_check_branch
      %73 = sbr.rel (0) target = $region21
    $region20: #{tpu_custom_call.1} parent=1 // pred_region
      %s75 = ssub.s32 128, 128
      %76 = vsyncadd [#allocation4], %s75
      %s78 = sshll.u32 [#allocation5], 4
      %s79 = int_to_ptr.vmem [resolvable:$true] %s78
      %81 = dma.vmem_to_hbm [thread:$0]  %s79, 128, %s3, [#allocation4]
    $region21: #{tpu_custom_call.1} parent=1 // pred_fallthru
      _
    // Predicated region
    $region22: #{tpu_custom_call.1} parent=1 // pred_check
      _
    $region23: #{tpu_custom_call.1} parent=1 // pred_check_branch
      %83 = sbr.rel (0) target = $region25
    $region24: #{tpu_custom_call.1} parent=1 // pred_region
      %84 = dma.done [#allocation4], 128
    $region25: #{tpu_custom_call.1} parent=1 // pred_fallthru
      _
    %85 = vsyncpa [#allocation3], 1
    %86 = vsyncpa [#allocation4], 1

</llo_original>
